<compile_context>
chip_gen: v7x
topology: tpu7x:2x2x1
jax: 0.10.0
libtpu: 0.0.40
codegen_flags: <defaults>
</compile_context>

<pallas_src>
import jax
import jax.numpy as jnp
from jax import lax
from jax.experimental import pallas as pl
from jax.experimental.pallas import tpu as pltpu

IN_DIM = 198
HID_DIM = 50
OUT_DIM = 1


def _round_up(n, m):
    return ((n + m - 1) // m) * m


def _mlp_kernel(x_ref, w1t_ref, b1_ref, w2_ref, b2_ref, o_ref):
    # Layer 1 on the MXU:  z[h, b] = sum_k w1t[h, k] * x[b, k]
    # A @ B^T orientation (contract lane dims of both operands) -> Mosaic
    # lowers this without an explicit vxpose of the (tb, 198) x tile.
    z = lax.dot_general(
        w1t_ref[...], x_ref[...],
        dimension_numbers=(((1,), (1,)), ((), ())),
        preferred_element_type=jnp.float32)              # (HID_PAD, TILE_B) f32
    z = z + b1_ref[...]                                  # bias bcast over lanes
    # sigmoid(z) == 0.5*(tanh(0.5*z)+1): one EUP tanh, no reciprocal.
    h_t = 0.5 * (jnp.tanh(0.5 * z) + 1.0)
    # Padded hidden rows evaluate to 0.5 here but their w2 entries are zero.
    # TODO(synk): if a v5e bundle dump shows vst-slot saturation from staging
    # the (64, tb) h_t through VMEM, chunk the lane dim with an inner
    # lax.fori_loop so the matmul->sigmoid->reduce stays in vregs.

    # Layer 2 off the MXU: VPU multiply + XLU sublane reduce -> lane-dense row.
    y = jnp.sum(h_t * w2_ref[...], axis=0, keepdims=True)   # (1, TILE_B)
    y = jax.nn.sigmoid(y + b2_ref[0])                        # b2: SMEM scalar
    o_ref[...] = y.reshape(o_ref.shape).astype(o_ref.dtype)  # (1, 1, TILE_B)


def network_forward(x, w1, b1, w2, b2, *, tile_b=8192):
    """Forward pass of `Network`.

    x : (B, 198) float32 (cast to bf16 internally for the MXU / HBM stream)
    w1: (198, 50)   (pre-transposed vs. PyTorch's (out, in) layout)
    b1: (50,)
    w2: (50, 1)
    b2: (1,)
    returns (B, 1) float32 win probabilities.
    """
    B, in_dim = x.shape
    hid = w1.shape[1]

    # bf16 compute dtype for the matmul operands; accumulation / bias /
    # activation math stay f32 inside the kernel.
    cdt = jnp.bfloat16
    x_c = x.astype(cdt)

    # Pad hidden 50 -> 64: whole bf16 vregs (2 rows/sublane), no masked
    # sublane ops in the bias / sigmoid / reduce.
    hid_pad = max(_round_up(hid, 16), 16)

    # Host-side (tiny, one-off) repack of the parameters.
    w1t = jnp.pad(jnp.transpose(w1), ((0, hid_pad - hid), (0, 0))).astype(cdt)
    b1c = jnp.pad(b1.astype(jnp.float32), (0, hid_pad - hid)).reshape(hid_pad, 1)
    w2c = jnp.pad(w2.astype(jnp.float32).reshape(-1),
                  (0, hid_pad - hid)).reshape(hid_pad, 1)
    b2c = b2.astype(jnp.float32).reshape(1,)             # SMEM scalar

    # Batch tile:
    #   * multiple of 128 -> lane-dense (1, tb) output row (no vst.msk)
    #   * capped so n_tiles >= 2 when B > 128 (v7x megacore gets both TCs busy)
    #   * default 8192 rows amortizes per-grid-step overhead.
    tb_two_tiles = _round_up(pl.cdiv(B, 2), 128)
    tb = max(128, min(_round_up(tile_b, 128), tb_two_tiles))
    n_tiles = pl.cdiv(B, tb)

    # VMEM budget: 2 double-buffered x tiles (lane-padded 198 -> 256) + two
    # h_t-sized f32 temporaries + headroom; capped for v7x's 64 MiB physical.
    x_tile_bytes = tb * _round_up(in_dim, 128) * jnp.dtype(cdt).itemsize
    ht_bytes = hid_pad * tb * 4
    vmem_limit = max(2 * x_tile_bytes + 2 * ht_bytes + (8 << 20), 32 << 20)
    vmem_limit = min(vmem_limit, 48 << 20)

    out = pl.pallas_call(
        _mlp_kernel,
        grid=(n_tiles,),
        # Lane-dense output slab: one (1, tb) row per batch tile.
        out_shape=jax.ShapeDtypeStruct((n_tiles, 1, tb), jnp.float32),
        in_specs=[
            # x streams tile-by-tile (double-buffered by the Pallas pipeline).
            pl.BlockSpec((tb, in_dim), lambda i: (i, 0)),
            # Weights / biases: constant index_map -> VMEM-resident, DMA'd once.
            pl.BlockSpec((hid_pad, in_dim), lambda i: (0, 0)),
            pl.BlockSpec((hid_pad, 1), lambda i: (0, 0)),
            pl.BlockSpec((hid_pad, 1), lambda i: (0, 0)),
            # b2: single scalar, lives in SMEM (no padded VMEM tile / DMA).
            pl.BlockSpec(memory_space=pltpu.MemorySpace.SMEM),
        ],
        out_specs=pl.BlockSpec((1, 1, tb), lambda i: (i, 0, 0)),
        compiler_params=pltpu.CompilerParams(
            # Batch tiles are independent -> shard across TCs on v7x megacore.
            dimension_semantics=("parallel",),
            vmem_limit_bytes=int(vmem_limit)),
    )(x_c, w1t, b1c, w2c, b2c)

    # Un-pad: (n_tiles, 1, tb) -> (B, 1).  Garbage tail lanes (past B) are
    # sliced off here and never consumed.
    return out.reshape(-1)[:B].reshape(B, OUT_DIM)


def init_params(key):
    """Deterministic init matching PyTorch nn.Linear default (uniform ±1/sqrt(fan_in))."""
    k1, k2, k3, k4 = jax.random.split(key, 4)
    bound1 = 1.0 / jnp.sqrt(jnp.float32(IN_DIM))
    bound2 = 1.0 / jnp.sqrt(jnp.float32(HID_DIM))
    w1 = jax.random.uniform(k1, (IN_DIM, HID_DIM), jnp.float32, -bound1, bound1)
    b1 = jax.random.uniform(k2, (HID_DIM,), jnp.float32, -bound1, bound1)
    w2 = jax.random.uniform(k3, (HID_DIM, OUT_DIM), jnp.float32, -bound2, bound2)
    b2 = jax.random.uniform(k4, (OUT_DIM,), jnp.float32, -bound2, bound2)
    return w1, b1, w2, b2


def _reference(x, w1, b1, w2, b2):
    return jax.nn.sigmoid(jax.nn.sigmoid(x @ w1 + b1) @ w2 + b2)


if __name__ == "__main__":
    key = jax.random.PRNGKey(0)
    k_x, k_p, k_x2 = jax.random.split(key, 3)
    w1, b1, w2, b2 = init_params(k_p)

    # bf16 x-stream fast path is not bit-identical to the f32 reference;
    # sigmoid probabilities agree to well within 5e-3 absolute.
    TOL = 5e-3

    # Small single-tile case (matches the PyTorch module's per-board usage).
    B = 8
    x = jax.random.uniform(k_x, (B, IN_DIM), jnp.float32)
    out = jax.block_until_ready(network_forward(x, w1, b1, w2, b2))
    ref = _reference(x, w1, b1, w2, b2)
    assert out.shape == (B, OUT_DIM)
    assert jnp.allclose(out, ref, atol=TOL), "mismatch vs reference (B=8)"

    # Multi-tile cases: exercise the batch grid, resident weights, and the
    # >=2-tile megacore split (default tile -> 2 tiles; tile_b=128 -> 4 tiles).
    B2 = 512
    x2 = jax.random.uniform(k_x2, (B2, IN_DIM), jnp.float32)
    ref2 = _reference(x2, w1, b1, w2, b2)

    out2 = jax.block_until_ready(network_forward(x2, w1, b1, w2, b2))
    assert out2.shape == (B2, OUT_DIM)
    assert jnp.allclose(out2, ref2, atol=TOL), "mismatch vs reference (B=512, default tile)"

    out3 = jax.block_until_ready(network_forward(x2, w1, b1, w2, b2, tile_b=128))
    assert out3.shape == (B2, OUT_DIM)
    assert jnp.allclose(out3, ref2, atol=TOL), "mismatch vs reference (B=512, tile_b=128)"

    print("KERNEL_OK")
</pallas_src>

<mosaic_0001>
module attributes {stable_mosaic.version = 11 : i64} {
  func.func @_mlp_kernel(%arg0: i32, %arg1: memref<128x198xbf16, #tpu.memory_space<vmem>>, %arg2: memref<64x198xbf16, #tpu.memory_space<vmem>>, %arg3: memref<64x1xf32, #tpu.memory_space<vmem>>, %arg4: memref<64x1xf32, #tpu.memory_space<vmem>>, %arg5: memref<1xf32, #tpu.memory_space<smem>>, %arg6: memref<1x1x128xf32, #tpu.memory_space<vmem>>) attributes {dimension_semantics = [#tpu.dimension_semantics<parallel>], iteration_bounds = array<i64: 1>, scalar_prefetch = 0 : i64, scratch_operands = 0 : i64, tpu.core_type = #tpu.core_type<tc>, window_params = [{transform_indices = @transform_0, window_bounds = array<i64: 128, 198>}, {pipeline_mode = #tpu.pipeline_mode<synchronous>, transform_indices = @transform_1, window_bounds = array<i64: 64, 198>}, {pipeline_mode = #tpu.pipeline_mode<synchronous>, transform_indices = @transform_2, window_bounds = array<i64: 64, 1>}, {pipeline_mode = #tpu.pipeline_mode<synchronous>, transform_indices = @transform_3, window_bounds = array<i64: 64, 1>}, {transform_indices = @transform_4, window_bounds = array<i64: 1>}, {transform_indices = @transform_5, window_bounds = array<i64: 1, 1, 128>}]} {
    %c0 = arith.constant 0 : index
    %c0_0 = arith.constant 0 : index
    %0 = vector.load %arg2[%c0, %c0_0] : memref<64x198xbf16, #tpu.memory_space<vmem>>, vector<64x198xbf16>
    %c0_1 = arith.constant 0 : index
    %c0_2 = arith.constant 0 : index
    %1 = vector.load %arg1[%c0_1, %c0_2] : memref<128x198xbf16, #tpu.memory_space<vmem>>, vector<128x198xbf16>
    %cst = arith.constant dense<0.000000e+00> : vector<64x128xf32>
    %2 = tpu.matmul %0, %1, %cst {dimension_numbers = #tpu.dot_dimension_numbers<[1], [1], [0], [0], [0, 0, 1, 0], [], []>} : vector<64x198xbf16>, vector<128x198xbf16>, vector<64x128xf32> -> vector<64x128xf32>
    %c0_3 = arith.constant 0 : index
    %c0_4 = arith.constant 0 : index
    %3 = vector.load %arg3[%c0_3, %c0_4] : memref<64x1xf32, #tpu.memory_space<vmem>>, vector<64x1xf32>
    %4 = vector.broadcast %3 : vector<64x1xf32> to vector<64x128xf32>
    %5 = arith.addf %2, %4 : vector<64x128xf32>
    %cst_5 = arith.constant 5.000000e-01 : f32
    %6 = vector.broadcast %cst_5 : f32 to vector<64x128xf32>
    %7 = arith.mulf %6, %5 : vector<64x128xf32>
    %8 = math.tanh %7 : vector<64x128xf32>
    %cst_6 = arith.constant 1.000000e+00 : f32
    %9 = vector.broadcast %cst_6 : f32 to vector<64x128xf32>
    %10 = arith.addf %8, %9 : vector<64x128xf32>
    %cst_7 = arith.constant 5.000000e-01 : f32
    %11 = vector.broadcast %cst_7 : f32 to vector<64x128xf32>
    %12 = arith.mulf %11, %10 : vector<64x128xf32>
    %c0_8 = arith.constant 0 : index
    %c0_9 = arith.constant 0 : index
    %13 = vector.load %arg4[%c0_8, %c0_9] : memref<64x1xf32, #tpu.memory_space<vmem>>, vector<64x1xf32>
    %14 = vector.broadcast %13 : vector<64x1xf32> to vector<64x128xf32>
    %15 = arith.mulf %12, %14 : vector<64x128xf32>
    %cst_10 = arith.constant dense<0.000000e+00> : vector<128xf32>
    %16 = vector.multi_reduction <add>, %15, %cst_10 [0] : vector<64x128xf32> to vector<128xf32>
    %17 = vector.shape_cast %16 : vector<128xf32> to vector<1x128xf32>
    %c0_11 = arith.constant 0 : index
    %18 = memref.load %arg5[%c0_11] : memref<1xf32, #tpu.memory_space<smem>>
    %19 = vector.broadcast %18 : f32 to vector<1x128xf32>
    %20 = arith.addf %17, %19 : vector<1x128xf32>
    %21 = arith.negf %20 : vector<1x128xf32>
    %22 = math.exp %21 : vector<1x128xf32>
    %cst_12 = arith.constant 1.000000e+00 : f32
    %23 = vector.broadcast %cst_12 : f32 to vector<1x128xf32>
    %24 = arith.addf %23, %22 : vector<1x128xf32>
    %25 = arith.divf %23, %24 : vector<1x128xf32>
    %26 = vector.shape_cast %25 : vector<1x128xf32> to vector<1x1x128xf32>
    %c0_13 = arith.constant 0 : index
    %c0_14 = arith.constant 0 : index
    %c0_15 = arith.constant 0 : index
    %27 = vector.load %arg6[%c0_13, %c0_14, %c0_15] : memref<1x1x128xf32, #tpu.memory_space<vmem>>, vector<1x1x128xf32>
    tpu.vector_store %arg6[%c0_13, %c0_14, %c0_15], %26 {strides = array<i32>} : memref<1x1x128xf32, #tpu.memory_space<vmem>>, vector<1x1x128xf32>,
    return
  }
  func.func @transform_0(%arg0: i32) -> (i32, i32) {
    %c0_i32 = arith.constant 0 : i32
    %c0_i32_0 = arith.constant 0 : i32
    return %arg0, %c0_i32 : i32, i32
  }
  func.func @transform_1(%arg0: i32) -> (i32, i32) {
    %c0_i32 = arith.constant 0 : i32
    %c0_i32_0 = arith.constant 0 : i32
    %c0_i32_1 = arith.constant 0 : i32
    return %c0_i32, %c0_i32_0 : i32, i32
  }
  func.func @transform_2(%arg0: i32) -> (i32, i32) {
    %c0_i32 = arith.constant 0 : i32
    %c0_i32_0 = arith.constant 0 : i32
    %c0_i32_1 = arith.constant 0 : i32
    return %c0_i32, %c0_i32_0 : i32, i32
  }
  func.func @transform_3(%arg0: i32) -> (i32, i32) {
    %c0_i32 = arith.constant 0 : i32
    %c0_i32_0 = arith.constant 0 : i32
    %c0_i32_1 = arith.constant 0 : i32
    return %c0_i32, %c0_i32_0 : i32, i32
  }
  func.func @transform_4(%arg0: i32) -> i32 {
    %c0_i32 = arith.constant 0 : i32
    %c0_i32_0 = arith.constant 0 : i32
    return %c0_i32 : i32
  }
  func.func @transform_5(%arg0: i32) -> (i32, i32, i32) {
    %c0_i32 = arith.constant 0 : i32
    %c0_i32_0 = arith.constant 0 : i32
    %c0_i32_1 = arith.constant 0 : i32
    return %arg0, %c0_i32, %c0_i32_0 : i32, i32, i32
  }
}

</mosaic_0001>

<llo_original>
// kernel: tpu_custom_call.1
$region0: #{tpu_custom_call.1}
  #allocation0 [shape = 'u32[]', space=smem, size = 0x4, offset = 0x4, fixed_abs, tag = 'smem constant byte address 0x4 - core index']
  #allocation1 [shape = 'u32[144,128]{1,0:T(1,128)}', space=vmem, size = 0x12000, scoped, tag = 'internal scratch']
  #allocation2 [shape = 'f32[1]{0:T(128)S(6)}', space=smem, size = 0x200, scoped, tag = 'scoped memory for tpu_custom_call.1']
  %s0 = inlined_call_operand.vmem [shape: bf16[8,198], index: 0, kind: input, shape index: {}]
  %s1 = inlined_call_operand.vmem [shape: bf16[64,198], index: 1, kind: input, shape index: {}]
  %s2 = inlined_call_operand.vmem [shape: f32[64,1], index: 2, kind: input, shape index: {}]
  %s3 = inlined_call_operand.vmem [shape: f32[64,1], index: 3, kind: input, shape index: {}]
  %s4 = inlined_call_operand.<no memory space> [shape: f32[1], index: 4, kind: input, shape index: {}]
  %s5 = inlined_call_operand.hbm [shape: f32[1,1,128], index: 5, kind: output, shape index: {}]
  %s6 = sld [smem:[#allocation0]]
  $region30: #{tpu_custom_call.1} parent=0
    _
  %s8 = ssub.s32 1, %s6
  %s9 = scalar_select 0, %s8, %s6
  %10 = sst [smem:[#allocation2]] %s4
  $region1: #{tpu_custom_call.1} parent=0
    #allocation3 [shape = 'u8[512]{0}', space=vmem, size = 0x400, scoped, tag = 'output window, operand 0, single buffered']
    #allocation4 [shape = 's32[1]{0}', space=sflag, size = 0x4, scoped, tag = 'scoped memory for tpu_custom_call.1']
    %11 = vsyncpa [#allocation4], 0
    // Predicated region
    $region2: #{tpu_custom_call.1} parent=1 // pred_check
      _
    $region3: #{tpu_custom_call.1} parent=1 // pred_check_branch
      %13 = sbr.rel (0) target = $region5
    $region4: #{tpu_custom_call.1} parent=1 // pred_region
      _
    $region5: #{tpu_custom_call.1} parent=1 // pred_fallthru
      _
    // Predicated region
    $region6: #{tpu_custom_call.1} parent=1 // pred_check
      _
    $region7: #{tpu_custom_call.1} parent=1 // pred_check_branch
      %15 = sbr.rel (0) target = $region9
    $region8: #{tpu_custom_call.1} parent=1 // pred_region
      _
    $region9: #{tpu_custom_call.1} parent=1 // pred_fallthru
      _
    // Predicated region
    $region10: #{tpu_custom_call.1} parent=1 // pred_check
      _
    $region11: #{tpu_custom_call.1} parent=1 // pred_check_branch
      %17 = sbr.rel (0) target = $region13
    $region12: #{tpu_custom_call.1} parent=1 // pred_region
      _
    $region13: #{tpu_custom_call.1} parent=1 // pred_fallthru
      _
    // Predicated region
    $region14: #{tpu_custom_call.1} parent=1 // pred_check
      _
    $region15: #{tpu_custom_call.1} parent=1 // pred_check_branch
      %19 = sbr.rel (0) target = $region17
    $region16: #{tpu_custom_call.1} parent=1 // pred_region
      _
    $region17: #{tpu_custom_call.1} parent=1 // pred_fallthru
      _
    // Predicated region
    $region18: #{tpu_custom_call.1} parent=1 // pred_check
      _
    $region19: #{tpu_custom_call.1} parent=1 // pred_check_branch
      %21 = sbr.rel (0) target = $region21
    $region20: #{tpu_custom_call.1} parent=1 // pred_region
      _
    $region21: #{tpu_custom_call.1} parent=1 // pred_fallthru
      _
    %v23 = vld [vmem:[%s1] sm:$0xff]
    %v24 = vld [vmem:[%s1 + $0x8] sm:$0xff]
    %v25 = vld [vmem:[%s1 + $0x10] sm:$0xff]
    %v26 = vld [vmem:[%s1 + $0x18] sm:$0xff]
    %v27 = vld [vmem:[%s1 + $0x20] sm:$0xff]
    %v28 = vld [vmem:[%s1 + $0x28] sm:$0xff]
    %v29 = vld [vmem:[%s1 + $0x30] sm:$0xff]
    %v30 = vld [vmem:[%s1 + $0x38] sm:$0xff]
    %v31 = vld [vmem:[%s0] sm:$0xff]
    %v32 = vld [vmem:[%s0 + $0x8] sm:$0xff]
    %v33 = vld [vmem:[%s0 + $0x10] sm:$0xff]
    %v34 = vld [vmem:[%s0 + $0x18] sm:$0xff]
    %v35 = vld [vmem:[%s0 + $0x20] sm:$0xff]
    %v36 = vld [vmem:[%s0 + $0x28] sm:$0xff]
    %v37 = vld [vmem:[%s0 + $0x30] sm:$0xff]
    %v38 = vld [vmem:[%s0 + $0x38] sm:$0xff]
    %v39 = vld [vmem:[%s0 + $0x40] sm:$0xff]
    %v40 = vld [vmem:[%s0 + $0x48] sm:$0xff]
    %v41 = vld [vmem:[%s0 + $0x50] sm:$0xff]
    %v42 = vld [vmem:[%s0 + $0x58] sm:$0xff]
    %v43 = vld [vmem:[%s0 + $0x60] sm:$0xff]
    %v44 = vld [vmem:[%s0 + $0x68] sm:$0xff]
    %v45 = vld [vmem:[%s0 + $0x70] sm:$0xff]
    %v46 = vld [vmem:[%s0 + $0x78] sm:$0xff]
    %v47 = vld [vmem:[%s2] sm:$0xff]
    %v48 = vld [vmem:[%s2 + $0x8] sm:$0xff]
    %v49 = vld [vmem:[%s2 + $0x10] sm:$0xff]
    %v50 = vld [vmem:[%s2 + $0x18] sm:$0xff]
    %v51 = vld [vmem:[%s2 + $0x20] sm:$0xff]
    %v52 = vld [vmem:[%s2 + $0x28] sm:$0xff]
    %v53 = vld [vmem:[%s2 + $0x30] sm:$0xff]
    %v54 = vld [vmem:[%s2 + $0x38] sm:$0xff]
    %56 = vset.pattern.permute.xlu0 0
    %57 = vperm.xlu0 %56, %v47
    %v58 = vpop.permute.xlu0 %57
    %61 = vset.pattern.permute.xlu0 0
    %62 = vperm.xlu0 %61, %v48
    %v63 = vpop.permute.xlu0 %62
    %66 = vset.pattern.permute.xlu0 0
    %67 = vperm.xlu0 %66, %v49
    %v68 = vpop.permute.xlu0 %67
    %71 = vset.pattern.permute.xlu0 0
    %72 = vperm.xlu0 %71, %v50
    %v73 = vpop.permute.xlu0 %72
    %76 = vset.pattern.permute.xlu0 0
    %77 = vperm.xlu0 %76, %v51
    %v78 = vpop.permute.xlu0 %77
    %81 = vset.pattern.permute.xlu0 0
    %82 = vperm.xlu0 %81, %v52
    %v83 = vpop.permute.xlu0 %82
    %86 = vset.pattern.permute.xlu0 0
    %87 = vperm.xlu0 %86, %v53
    %v88 = vpop.permute.xlu0 %87
    %91 = vset.pattern.permute.xlu0 0
    %92 = vperm.xlu0 %91, %v54
    %v93 = vpop.permute.xlu0 %92
    %v103 = vunpack.c.l.b16 %v23
    %v104 = vunpack.c.h.b16 %v23
    %v105 = vunpack.c.l.b16 %v24
    %v106 = vunpack.c.h.b16 %v24
    %v107 = vunpack.c.l.b16 %v25
    %v108 = vunpack.c.h.b16 %v25
    %v109 = vunpack.c.l.b16 %v26
    %v110 = vunpack.c.h.b16 %v26
    %v111 = vunpack.c.l.b16 %v27
    %v112 = vunpack.c.h.b16 %v27
    %v113 = vunpack.c.l.b16 %v28
    %v114 = vunpack.c.h.b16 %v28
    %v115 = vunpack.c.l.b16 %v29
    %v116 = vunpack.c.h.b16 %v29
    %v117 = vunpack.c.l.b16 %v30
    %v118 = vunpack.c.h.b16 %v30
    %v119 = vpack.c.b16 %v105, %v103
    %v120 = vpack.c.b16 %v106, %v104
    %v121 = vpack.c.b16 %v109, %v107
    %v122 = vpack.c.b16 %v110, %v108
    %v123 = vpack.c.b16 %v113, %v111
    %v124 = vpack.c.b16 %v114, %v112
    %v125 = vpack.c.b16 %v117, %v115
    %v126 = vpack.c.b16 %v118, %v116
    %v147 = vunpack.c.l.b16 %v31
    %v148 = vunpack.c.h.b16 %v31
    %v149 = vunpack.c.l.b16 %v32
    %v150 = vunpack.c.h.b16 %v32
    %v151 = vunpack.c.l.b16 %v33
    %v152 = vunpack.c.h.b16 %v33
    %v153 = vunpack.c.l.b16 %v34
    %v154 = vunpack.c.h.b16 %v34
    %v155 = vunpack.c.l.b16 %v35
    %v156 = vunpack.c.h.b16 %v35
    %v157 = vunpack.c.l.b16 %v36
    %v158 = vunpack.c.h.b16 %v36
    %v159 = vunpack.c.l.b16 %v37
    %v160 = vunpack.c.h.b16 %v37
    %v161 = vunpack.c.l.b16 %v38
    %v162 = vunpack.c.h.b16 %v38
    %v163 = vunpack.c.l.b16 %v39
    %v164 = vunpack.c.h.b16 %v39
    %v165 = vunpack.c.l.b16 %v40
    %v166 = vunpack.c.h.b16 %v40
    %v167 = vunpack.c.l.b16 %v41
    %v168 = vunpack.c.h.b16 %v41
    %v169 = vunpack.c.l.b16 %v42
    %v170 = vunpack.c.h.b16 %v42
    %v171 = vunpack.c.l.b16 %v43
    %v172 = vunpack.c.h.b16 %v43
    %v173 = vunpack.c.l.b16 %v44
    %v174 = vunpack.c.h.b16 %v44
    %v175 = vunpack.c.l.b16 %v45
    %v176 = vunpack.c.h.b16 %v45
    %v177 = vunpack.c.l.b16 %v46
    %v178 = vunpack.c.h.b16 %v46
    %v179 = vpack.c.b16 %v149, %v147
    %v180 = vpack.c.b16 %v150, %v148
    %v181 = vpack.c.b16 %v153, %v151
    %v182 = vpack.c.b16 %v154, %v152
    %v183 = vpack.c.b16 %v157, %v155
    %v184 = vpack.c.b16 %v158, %v156
    %v185 = vpack.c.b16 %v161, %v159
    %v186 = vpack.c.b16 %v162, %v160
    %v187 = vpack.c.b16 %v165, %v163
    %v188 = vpack.c.b16 %v166, %v164
    %v189 = vpack.c.b16 %v169, %v167
    %v190 = vpack.c.b16 %v170, %v168
    %v191 = vpack.c.b16 %v173, %v171
    %v192 = vpack.c.b16 %v174, %v172
    %v193 = vpack.c.b16 %v177, %v175
    %v194 = vpack.c.b16 %v178, %v176
    %vm203 = vcmask 572416
    %v205 = vsel %vm203, %v120, 0
    %v208 = vsel %vm203, %v122, 0
    %v211 = vsel %vm203, %v124, 0
    %v214 = vsel %vm203, %v126, 0
    %v217 = vsel %vm203, %v180, 0
    %v220 = vsel %vm203, %v182, 0
    %v223 = vsel %vm203, %v184, 0
    %v226 = vsel %vm203, %v186, 0
    %v229 = vsel %vm203, %v188, 0
    %v232 = vsel %vm203, %v190, 0
    %v235 = vsel %vm203, %v192, 0
    %v238 = vsel %vm203, %v194, 0
    %240 = vmatprep.subr.bf16.mxu0 %v217
    %241 = vmatpush1.bf16.xpose.msra.mxu0 %v179
    %242 = vmatprep.subr.bf16.mxu0 %v220
    %243 = vmatpush1.bf16.xpose.msra.mxu0 %v181
    %244 = vmatprep.subr.bf16.mxu0 %v223
    %245 = vmatpush1.bf16.xpose.msra.mxu0 %v183
    %246 = vmatprep.subr.bf16.mxu0 %v226
    %247 = vmatpush1.bf16.xpose.msra.mxu0 %v185
    %248 = vmatprep.subr.bf16.mxu0 %v229
    %249 = vmatpush1.bf16.xpose.msra.mxu0 %v187
    %250 = vmatprep.subr.bf16.mxu0 %v232
    %251 = vmatpush1.bf16.xpose.msra.mxu0 %v189
    %252 = vmatprep.subr.bf16.mxu0 %v235
    %253 = vmatpush1.bf16.xpose.msra.mxu0 %v191
    %254 = vmatprep.subr.bf16.mxu0 %v238
    %255 = vmatpush1.bf16.xpose.msra.mxu0 %v193
    %256 = vmatprep.subr.bf16.mxu0 0
    %257 = vmatpush1.bf16.xpose.msra.mxu0 0
    %258 = vmatprep.subr.bf16.mxu0 0
    %259 = vmatpush1.bf16.xpose.msra.mxu0 0
    %260 = vmatprep.subr.bf16.mxu0 0
    %261 = vmatpush1.bf16.xpose.msra.mxu0 0
    %262 = vmatprep.subr.bf16.mxu0 0
    %263 = vmatpush1.bf16.xpose.msra.mxu0 0
    %264 = vmatprep.subr.bf16.mxu0 0
    %265 = vmatpush1.bf16.xpose.msra.mxu0 0
    %266 = vmatprep.subr.bf16.mxu0 0
    %267 = vmatpush1.bf16.xpose.msra.mxu0 0
    %268 = vmatprep.subr.bf16.mxu0 0
    %269 = vmatpush1.bf16.xpose.msra.mxu0 0
    %270 = vmatprep.subr.bf16.mxu0 0
    %271 = vmatpush1.bf16.xpose.msra.mxu0 0
    %272 = vmatprep.mubr.bf16.mxu0 %v205
    %273 = vmatmul.mubr.bf16.gmra.mrb[0].mxu0 %v119
    %v274 = vpop.f32.mrb[0].mxu0
    %v275 = vadd.f32 %v58, %v274
    %v276 = vpop.f32.mrb[0].mxu0
    %v277 = vpop.f32.mrb[0].mxu0
    %v278 = vadd.f32 %v63, %v277
    %v279 = vpop.f32.mrb[0].mxu0
    %280 = vmatprep.mubr.bf16.mxu0 %v208
    %281 = vmatmul.mubr.bf16.gmra.mrb[0].mxu0 %v121
    %v282 = vpop.f32.mrb[0].mxu0
    %v283 = vadd.f32 %v68, %v282
    %v284 = vpop.f32.mrb[0].mxu0
    %v285 = vpop.f32.mrb[0].mxu0
    %v286 = vadd.f32 %v73, %v285
    %v287 = vpop.f32.mrb[0].mxu0
    %288 = vmatprep.mubr.bf16.mxu0 %v211
    %289 = vmatmul.mubr.bf16.gmra.mrb[0].mxu0 %v123
    %v290 = vpop.f32.mrb[0].mxu0
    %v291 = vadd.f32 %v78, %v290
    %v292 = vpop.f32.mrb[0].mxu0
    %v293 = vpop.f32.mrb[0].mxu0
    %v294 = vadd.f32 %v83, %v293
    %v295 = vpop.f32.mrb[0].mxu0
    %296 = vmatprep.mubr.bf16.mxu0 %v214
    %297 = vmatmul.mubr.bf16.gmra.mrb[0].mxu0 %v125
    %v298 = vpop.f32.mrb[0].mxu0
    %v299 = vadd.f32 %v88, %v298
    %v300 = vpop.f32.mrb[0].mxu0
    %v301 = vpop.f32.mrb[0].mxu0
    %v302 = vadd.f32 %v93, %v301
    %v303 = vpop.f32.mrb[0].mxu0
    %304 = vdwg.mxu0
    %v305 = vmul.f32 %v275, 0.5
    %v306 = vmul.f32 %v278, 0.5
    %v307 = vmul.f32 %v283, 0.5
    %v308 = vmul.f32 %v286, 0.5
    %v309 = vmul.f32 %v291, 0.5
    %v310 = vmul.f32 %v294, 0.5
    %v311 = vmul.f32 %v299, 0.5
    %v312 = vmul.f32 %v302, 0.5
    %v313 = vtanh.pop %v305
    %v314 = vtanh.pop %v306
    %v315 = vtanh.pop %v307
    %v316 = vtanh.pop %v308
    %v317 = vtanh.pop %v309
    %v318 = vtanh.pop %v310
    %v319 = vtanh.pop %v311
    %v320 = vtanh.pop %v312
    %v321 = vadd.f32 %v313, 1.0
    %v322 = vadd.f32 %v314, 1.0
    %v323 = vadd.f32 %v315, 1.0
    %v324 = vadd.f32 %v316, 1.0
    %v325 = vadd.f32 %v317, 1.0
    %v326 = vadd.f32 %v318, 1.0
    %v327 = vadd.f32 %v319, 1.0
    %v328 = vadd.f32 %v320, 1.0
    %v329 = vmul.f32 %v321, 0.5
    %v330 = vmul.f32 %v322, 0.5
    %v331 = vmul.f32 %v323, 0.5
    %v332 = vmul.f32 %v324, 0.5
    %v333 = vmul.f32 %v325, 0.5
    %v334 = vmul.f32 %v326, 0.5
    %v335 = vmul.f32 %v327, 0.5
    %v336 = vmul.f32 %v328, 0.5
    %v337 = vld [vmem:[%s3] sm:$0xff]
    %v338 = vld [vmem:[%s3 + $0x8] sm:$0xff]
    %v339 = vld [vmem:[%s3 + $0x10] sm:$0xff]
    %v340 = vld [vmem:[%s3 + $0x18] sm:$0xff]
    %v341 = vld [vmem:[%s3 + $0x20] sm:$0xff]
    %v342 = vld [vmem:[%s3 + $0x28] sm:$0xff]
    %v343 = vld [vmem:[%s3 + $0x30] sm:$0xff]
    %v344 = vld [vmem:[%s3 + $0x38] sm:$0xff]
    %346 = vset.pattern.permute.xlu0 0
    %347 = vperm.xlu0 %346, %v337
    %v348 = vpop.permute.xlu0 %347
    %351 = vset.pattern.permute.xlu0 0
    %352 = vperm.xlu0 %351, %v338
    %v353 = vpop.permute.xlu0 %352
    %356 = vset.pattern.permute.xlu0 0
    %357 = vperm.xlu0 %356, %v339
    %v358 = vpop.permute.xlu0 %357
    %361 = vset.pattern.permute.xlu0 0
    %362 = vperm.xlu0 %361, %v340
    %v363 = vpop.permute.xlu0 %362
    %366 = vset.pattern.permute.xlu0 0
    %367 = vperm.xlu0 %366, %v341
    %v368 = vpop.permute.xlu0 %367
    %371 = vset.pattern.permute.xlu0 0
    %372 = vperm.xlu0 %371, %v342
    %v373 = vpop.permute.xlu0 %372
    %376 = vset.pattern.permute.xlu0 0
    %377 = vperm.xlu0 %376, %v343
    %v378 = vpop.permute.xlu0 %377
    %381 = vset.pattern.permute.xlu0 0
    %382 = vperm.xlu0 %381, %v344
    %v383 = vpop.permute.xlu0 %382
    %v385 = vmul.f32 %v329, %v348
    %v386 = vmul.f32 %v330, %v353
    %v387 = vmul.f32 %v331, %v358
    %v388 = vmul.f32 %v332, %v363
    %v389 = vmul.f32 %v333, %v368
    %v390 = vmul.f32 %v334, %v373
    %v391 = vmul.f32 %v335, %v378
    %v392 = vmul.f32 %v336, %v383
    %v393 = vadd.f32 %v385, %v386
    %v394 = vadd.f32 %v393, %v387
    %v395 = vadd.f32 %v394, %v388
    %v396 = vadd.f32 %v395, %v389
    %v397 = vadd.f32 %v396, %v390
    %v398 = vadd.f32 %v397, %v391
    %v399 = vadd.f32 %v398, %v392
    %v400 = vrot.slane %v399, 4
    %v401 = vadd.f32 %v399, %v400
    %v402 = vrot.slane %v401, 2
    %v403 = vadd.f32 %v401, %v402
    %v404 = vrot.slane %v403, 1
    %v405 = vadd.f32 %v403, %v404
    %s406 = sld [smem:[#allocation2]]
    %v407 = vstv %s406
    %v408 = vadd.f32 %v405, %v407
    %v409 = vxor.u32 %v408, 2147483648
    %v410 = vmul.f32 %v409, 1.442695
    %v411 = vpow.pop %v410
    %v412 = vadd.f32 %v411, 1.0
    %v413 = vrcp.pop %v412
    %v414 = vmul.f32 1.0, %v413
    %415 = vst [vmem:[#allocation3] sm:$0x1] %v414
    // Predicated region
    $region22: #{tpu_custom_call.1} parent=1 // pred_check
      _
    $region23: #{tpu_custom_call.1} parent=1 // pred_check_branch
      %417 = sbr.rel (0) target = $region25
    $region24: #{tpu_custom_call.1} parent=1 // pred_region
      %s419 = ssub.s32 16, 16
      %420 = vsyncadd [#allocation4], %s419
      %s422 = sshll.u32 [#allocation3], 4
      %s423 = int_to_ptr.vmem [resolvable:$true] %s422
      %425 = dma.vmem_to_hbm [thread:$0]  %s423, 16, %s5, [#allocation4]
    $region25: #{tpu_custom_call.1} parent=1 // pred_fallthru
      _
    // Predicated region
    $region26: #{tpu_custom_call.1} parent=1 // pred_check
      _
    $region27: #{tpu_custom_call.1} parent=1 // pred_check_branch
      %427 = sbr.rel (0) target = $region29
    $region28: #{tpu_custom_call.1} parent=1 // pred_region
      %428 = dma.done [#allocation4], 16
    $region29: #{tpu_custom_call.1} parent=1 // pred_fallthru
      _
    %429 = vsyncpa [#allocation4], 1

</llo_original>
